<compile_context>
chip_gen: v7x
topology: tpu7x:2x2x1
jax: 0.10.0
libtpu: 0.0.40
codegen_flags: <defaults>
</compile_context>

<pallas_src>
import functools

import jax
import jax.numpy as jnp
from jax.experimental import pallas as pl
from jax.experimental.pallas import tpu as pltpu


def _round_up(n, m):
    return ((n + m - 1) // m) * m


def _cdiv(a, b):
    return -(-a // b)


def _sublane_mult(dtype):
    # f32 -> 8, bf16 -> 16, int8/fp8 -> 32 (sub-32-bit dtypes pack sublanes).
    return max(8, 32 // jnp.dtype(dtype).itemsize)


@functools.lru_cache(maxsize=None)
def _tpu_hw_params():
    """Returns (vmem_capacity_bytes, tensorcores_per_chip), with safe fallbacks."""
    vmem_cap = 128 << 20          # v5e / v6e physical VMEM
    num_tc = 1
    try:
        info = pltpu.get_tpu_info()
        vmem_cap = int(getattr(info, "vmem_capacity_bytes", vmem_cap))
        for attr in ("num_cores", "tensorcores_per_chip", "cores_per_chip"):
            val = getattr(info, attr, None)
            if val:
                num_tc = int(val)
                break
    except Exception:
        pass
    try:
        kind = jax.devices()[0].device_kind.lower()
    except Exception:
        kind = ""
    if "v7" in kind or "tpu7" in kind:
        num_tc = max(num_tc, 2)
        vmem_cap = min(vmem_cap, 64 << 20)
    return vmem_cap, num_tc


def _block_spec(shape, index_map, buffer_count=None):
    """BlockSpec with optional explicit pipeline depth (graceful fallback)."""
    if buffer_count is not None:
        try:
            return pl.BlockSpec(shape, index_map,
                                pipeline_mode=pl.Buffered(buffer_count))
        except (TypeError, AttributeError):
            pass
    return pl.BlockSpec(shape, index_map)


# ---------------------------------------------------------------------------
# Kernels
# ---------------------------------------------------------------------------

def _expert_resident_kernel(x_ref, w_ref, b_ref, o_ref):
    """Fused multi-layer MLP with the full weight stack resident in VMEM.

    x_ref : (TB, Dp)       batch tile
    w_ref : (L, Dp, Dp)    stacked weights (single-buffered, grid-invariant)
    b_ref : (L, 1, Dp)     stacked biases
    o_ref : (TB, Dp)       output tile
    """
    num_layers = w_ref.shape[0]
    compute_dtype = w_ref.dtype

    # Hoist bias load + f32 cast out of the unrolled layer loop (no CSE in JAX).
    b_all = b_ref[:, 0, :].astype(jnp.float32)      # (L, Dp)

    h = x_ref[...]
    if h.dtype != compute_dtype:
        h = h.astype(compute_dtype)                 # feed MXU in native dtype

    # This path is only selected for small L (<= 8), so a static unroll is fine;
    # deeper stacks go to the layer-streamed kernel (grid boundary bounds live
    # ranges there).
    for l in range(num_layers):
        acc = jnp.dot(h, w_ref[l], preferred_element_type=jnp.float32)
        acc = jnp.maximum(acc + b_all[l][None, :], 0.0)     # Linear + ReLU block
        h = acc if compute_dtype == jnp.float32 else acc.astype(compute_dtype)

    o_ref[...] = h.astype(o_ref.dtype)


def _expert_stream_kernel(x_ref, w_ref, b_ref, o_ref, h_ref):
    """Layer-streamed variant: grid = (batch_tiles, L).

    Per-layer weights are DMA'd (double-buffered by the pipeline) while the
    running activation lives in VMEM scratch, so VMEM use is ~2*Dp^2 + one
    activation tile regardless of L.

    x_ref : (TB, Dp)    w_ref : (1, Dp, Dp)    b_ref : (1, 1, Dp)
    o_ref : (TB, Dp)    h_ref : (TB, Dp) VMEM scratch (running activation)
    """
    l = pl.program_id(1)
    last = pl.num_programs(1) - 1

    @pl.when(l == 0)
    def _():
        h_ref[...] = x_ref[...].astype(h_ref.dtype)

    acc = jnp.dot(h_ref[...], w_ref[0], preferred_element_type=jnp.float32)
    acc = jnp.maximum(acc + b_ref[0, 0][None, :].astype(jnp.float32), 0.0)
    h_ref[...] = acc.astype(h_ref.dtype)

    @pl.when(l == last)
    def _():
        o_ref[...] = h_ref[...].astype(o_ref.dtype)


# ---------------------------------------------------------------------------
# Wrappers
# ---------------------------------------------------------------------------

def pad_expert_params(weights, biases, compute_dtype=None):
    """One-time parameter prep (hoisted out of the per-call forward path).

    Pads the hidden dim to a 128-lane multiple (zero rows/cols are exact:
    padded outputs stay 0 through bias-add and ReLU) and optionally casts the
    weights to a faster MXU compute dtype (e.g. jnp.bfloat16 — opt-in since it
    changes numerics slightly).
    """
    L, D_in, D_out = weights.shape
    assert D_in == D_out, "stacked expert layers require in_dim == out_dim"
    if compute_dtype is not None:
        weights = weights.astype(compute_dtype)
    D_pad = _round_up(D_in, 128)
    w_p = jnp.zeros((L, D_pad, D_pad), weights.dtype).at[:, :D_in, :D_out].set(weights)
    b_p = jnp.zeros((L, 1, D_pad), biases.dtype).at[:, 0, :D_out].set(biases)
    return w_p, b_p


@functools.partial(jax.jit, static_argnames=("force_stream",))
def expert_forward(x, w_p, b_p, *, force_stream=False):
    """Runs the ExpertModule forward pass.

    x   : [B, D]            (unpadded activations)
    w_p : [L, Dp, Dp]       (pre-padded weights from pad_expert_params)
    b_p : [L, 1, Dp]        (pre-padded biases)
    returns [B, D]
    """
    B, D = x.shape
    L, D_pad, D_pad2 = w_p.shape
    assert D_pad == D_pad2 and D <= D_pad and D_pad % 128 == 0

    x_item = x.dtype.itemsize
    w_item = w_p.dtype.itemsize
    b_item = b_p.dtype.itemsize

    vmem_cap, num_tc = _tpu_hw_params()
    cap = max(16 << 20, vmem_cap - (16 << 20))   # leave headroom for Mosaic scratch

    # --- Batch tiling: dtype-aware sublane rounding, balanced tiles, at least
    #     `num_tc` parallel steps so both v7x TensorCores get work; bigger
    #     (512-ish) tiles on single-TC chips to amortize per-step overhead.
    sub = max(_sublane_mult(x.dtype), _sublane_mult(w_p.dtype))
    B_sub = _round_up(B, sub)
    target_tile = 256 if num_tc >= 2 else 512
    n_tiles = _cdiv(B_sub, target_tile)
    if num_tc >= 2 and B_sub >= 2 * sub:
        n_tiles = max(n_tiles, num_tc)
    tile_b = _round_up(_cdiv(B_sub, n_tiles), sub)
    n_tiles = _cdiv(B_sub, tile_b)
    B_pad = n_tiles * tile_b
    assert tile_b % sub == 0

    if B_pad != B or D_pad != D:
        x_p = jnp.zeros((B_pad, D_pad), x.dtype).at[:B, :D].set(x)
    else:
        x_p = x

    # --- VMEM budgets (weight stack single-buffered in the resident path).
    act_bytes = 4 * tile_b * D_pad * x_item            # 2x in + 2x out tiles
    resident_bytes = L * D_pad * D_pad * w_item + L * D_pad * b_item
    margin = 2 << 20
    use_stream = bool(force_stream) or (L > 8) or \
        (act_bytes + resident_bytes + margin > cap)

    cost = pl.CostEstimate(
        flops=2 * B_pad * D_pad * D_pad * L,
        transcendentals=0,
        bytes_accessed=int(L * D_pad * D_pad * w_item + L * D_pad * b_item
                           + 2 * B_pad * D_pad * x_item),
    )

    if not use_stream:
        vmem_limit = int(max(16 << 20,
                             min(act_bytes + resident_bytes + margin, cap)))
        out_p = pl.pallas_call(
            _expert_resident_kernel,
            out_shape=jax.ShapeDtypeStruct((B_pad, D_pad), x.dtype),
            grid_spec=pltpu.PrefetchScalarGridSpec(
                num_scalar_prefetch=0,
                grid=(n_tiles,),
                in_specs=[
                    _block_spec((tile_b, D_pad), lambda i: (i, 0)),
                    # Grid-invariant weight/bias stacks: single-buffered
                    # (double-buffering a constant index_map only burns VMEM).
                    _block_spec((L, D_pad, D_pad), lambda i: (0, 0, 0),
                                buffer_count=1),
                    _block_spec((L, 1, D_pad), lambda i: (0, 0, 0),
                                buffer_count=1),
                ],
                out_specs=pl.BlockSpec((tile_b, D_pad), lambda i: (i, 0)),
            ),
            compiler_params=pltpu.CompilerParams(
                dimension_semantics=("parallel",),
                vmem_limit_bytes=vmem_limit,
            ),
            cost_estimate=cost,
        )(x_p, w_p, b_p)
    else:
        stream_bytes = (act_bytes
                        + 2 * D_pad * D_pad * w_item    # double-buffered layer W
                        + 2 * D_pad * b_item
                        + tile_b * D_pad * w_item       # running-activation scratch
                        + margin)
        vmem_limit = int(max(16 << 20, min(stream_bytes, cap)))
        out_p = pl.pallas_call(
            _expert_stream_kernel,
            out_shape=jax.ShapeDtypeStruct((B_pad, D_pad), x.dtype),
            grid_spec=pltpu.PrefetchScalarGridSpec(
                num_scalar_prefetch=0,
                grid=(n_tiles, L),                      # layers = innermost axis
                in_specs=[
                    pl.BlockSpec((tile_b, D_pad), lambda i, l: (i, 0)),
                    pl.BlockSpec((1, D_pad, D_pad), lambda i, l: (l, 0, 0)),
                    pl.BlockSpec((1, 1, D_pad), lambda i, l: (l, 0, 0)),
                ],
                out_specs=pl.BlockSpec((tile_b, D_pad), lambda i, l: (i, 0)),
                scratch_shapes=[pltpu.VMEM((tile_b, D_pad), w_p.dtype)],
            ),
            compiler_params=pltpu.CompilerParams(
                dimension_semantics=("parallel", "arbitrary"),
                vmem_limit_bytes=vmem_limit,
            ),
            cost_estimate=cost,
        )(x_p, w_p, b_p)

    return out_p[:B, :D]


def _reference(x, weights, biases):
    h = x.astype(jnp.float32)
    for l in range(weights.shape[0]):
        h = jnp.maximum(h @ weights[l].astype(jnp.float32)
                        + biases[l].astype(jnp.float32), 0.0)
    return h.astype(x.dtype)


if __name__ == "__main__":
    # Small shapes consistent with the module: expert with 2 layers,
    # block_in_dim == block_out_dim == 32, batch of 16 tokens.
    BATCH, HIDDEN, LAYERS = 16, 32, 2

    key = jax.random.PRNGKey(0)
    kx, kw, kb = jax.random.split(key, 3)

    x = jax.random.normal(kx, (BATCH, HIDDEN), dtype=jnp.float32)
    # Deterministic synthetic parameters (not a checkpoint load).
    weights = jax.random.normal(kw, (LAYERS, HIDDEN, HIDDEN),
                                dtype=jnp.float32) * (1.0 / jnp.sqrt(HIDDEN))
    biases = jax.random.normal(kb, (LAYERS, HIDDEN), dtype=jnp.float32) * 0.01

    ref = _reference(x, weights, biases)

    # One-time parameter layout prep (padding hoisted out of the forward path).
    w_p, b_p = pad_expert_params(weights, biases)

    # 1) Resident-weight-stack path (default for small L*D).
    out = jax.block_until_ready(expert_forward(x, w_p, b_p))
    assert out.shape == (BATCH, HIDDEN)
    assert jnp.allclose(out, ref, atol=1e-4, rtol=1e-4), "resident path mismatch"

    # 2) Layer-streamed path (what large L*D / small-VMEM configs use);
    #    forced here at small shape to verify it.
    out_s = jax.block_until_ready(expert_forward(x, w_p, b_p, force_stream=True))
    assert jnp.allclose(out_s, ref, atol=1e-4, rtol=1e-4), "streamed path mismatch"

    # 3) Opt-in bf16 MXU compute (f32 accumulation), looser tolerance.
    w_bf, b_bf = pad_expert_params(weights, biases, compute_dtype=jnp.bfloat16)
    out_bf = jax.block_until_ready(expert_forward(x, w_bf, b_bf))
    assert jnp.allclose(out_bf, ref, atol=1e-1, rtol=1e-1), "bf16 path mismatch"

    print("KERNEL_OK")
</pallas_src>

<mosaic_0001>
module attributes {stable_mosaic.version = 11 : i64} {
  func.func @_expert_resident_kernel(%arg0: i32, %arg1: memref<16x128xf32, #tpu.memory_space<vmem>>, %arg2: memref<2x128x128xf32, #tpu.memory_space<vmem>>, %arg3: memref<2x1x128xf32, #tpu.memory_space<vmem>>, %arg4: memref<16x128xf32, #tpu.memory_space<vmem>>) attributes {dimension_semantics = [#tpu.dimension_semantics<parallel>], iteration_bounds = array<i64: 1>, scalar_prefetch = 0 : i64, scratch_operands = 0 : i64, tpu.core_type = #tpu.core_type<tc>, window_params = [{transform_indices = @transform_0, window_bounds = array<i64: 16, 128>}, {pipeline_mode = #tpu.pipeline_mode<synchronous>, transform_indices = @transform_1, window_bounds = array<i64: 2, 128, 128>}, {pipeline_mode = #tpu.pipeline_mode<synchronous>, transform_indices = @transform_2, window_bounds = array<i64: 2, 1, 128>}, {transform_indices = @transform_3, window_bounds = array<i64: 16, 128>}]} {
    %c0 = arith.constant 0 : index
    %c0_0 = arith.constant 0 : index
    %c0_1 = arith.constant 0 : index
    %0 = vector.load %arg3[%c0, %c0_0, %c0_1] : memref<2x1x128xf32, #tpu.memory_space<vmem>>, vector<2x1x128xf32>
    %1 = vector.shape_cast %0 : vector<2x1x128xf32> to vector<2x128xf32>
    %c0_2 = arith.constant 0 : index
    %c0_3 = arith.constant 0 : index
    %2 = vector.load %arg1[%c0_2, %c0_3] : memref<16x128xf32, #tpu.memory_space<vmem>>, vector<16x128xf32>
    %c0_4 = arith.constant 0 : index
    %c0_5 = arith.constant 0 : index
    %c0_6 = arith.constant 0 : index
    %3 = vector.load %arg2[%c0_4, %c0_5, %c0_6] : memref<2x128x128xf32, #tpu.memory_space<vmem>>, vector<1x128x128xf32>
    %4 = vector.shape_cast %3 : vector<1x128x128xf32> to vector<128x128xf32>
    %cst = arith.constant dense<0.000000e+00> : vector<16x128xf32>
    %5 = tpu.matmul %2, %4, %cst {dimension_numbers = #tpu.dot_dimension_numbers<[1], [0], [0], [1], [0, 0, 1, 1], [], []>} : vector<16x128xf32>, vector<128x128xf32>, vector<16x128xf32> -> vector<16x128xf32>
    %6 = vector.extract_strided_slice %1 {offsets = [0, 0], sizes = [1, 128], strides = [1, 1]} : vector<2x128xf32> to vector<1x128xf32>
    %7 = vector.shape_cast %6 : vector<1x128xf32> to vector<128xf32>
    %8 = vector.shape_cast %7 : vector<128xf32> to vector<1x128xf32>
    %9 = vector.broadcast %8 : vector<1x128xf32> to vector<16x128xf32>
    %10 = arith.addf %5, %9 : vector<16x128xf32>
    %cst_7 = arith.constant 0.000000e+00 : f32
    %11 = vector.broadcast %cst_7 : f32 to vector<16x128xf32>
    %12 = arith.maximumf %10, %11 : vector<16x128xf32>
    %c1 = arith.constant 1 : index
    %c0_8 = arith.constant 0 : index
    %c0_9 = arith.constant 0 : index
    %13 = vector.load %arg2[%c1, %c0_8, %c0_9] : memref<2x128x128xf32, #tpu.memory_space<vmem>>, vector<1x128x128xf32>
    %14 = vector.shape_cast %13 : vector<1x128x128xf32> to vector<128x128xf32>
    %cst_10 = arith.constant dense<0.000000e+00> : vector<16x128xf32>
    %15 = tpu.matmul %12, %14, %cst_10 {dimension_numbers = #tpu.dot_dimension_numbers<[1], [0], [0], [1], [0, 0, 1, 1], [], []>} : vector<16x128xf32>, vector<128x128xf32>, vector<16x128xf32> -> vector<16x128xf32>
    %16 = vector.extract_strided_slice %1 {offsets = [1, 0], sizes = [1, 128], strides = [1, 1]} : vector<2x128xf32> to vector<1x128xf32>
    %17 = vector.shape_cast %16 : vector<1x128xf32> to vector<128xf32>
    %18 = vector.shape_cast %17 : vector<128xf32> to vector<1x128xf32>
    %19 = vector.broadcast %18 : vector<1x128xf32> to vector<16x128xf32>
    %20 = arith.addf %15, %19 : vector<16x128xf32>
    %cst_11 = arith.constant 0.000000e+00 : f32
    %21 = vector.broadcast %cst_11 : f32 to vector<16x128xf32>
    %22 = arith.maximumf %20, %21 : vector<16x128xf32>
    %c0_12 = arith.constant 0 : index
    %c0_13 = arith.constant 0 : index
    %23 = vector.load %arg4[%c0_12, %c0_13] : memref<16x128xf32, #tpu.memory_space<vmem>>, vector<16x128xf32>
    tpu.vector_store %arg4[%c0_12, %c0_13], %22 {strides = array<i32>} : memref<16x128xf32, #tpu.memory_space<vmem>>, vector<16x128xf32>,
    return
  }
  func.func @transform_0(%arg0: i32) -> (i32, i32) {
    %c0_i32 = arith.constant 0 : i32
    %c0_i32_0 = arith.constant 0 : i32
    return %arg0, %c0_i32 : i32, i32
  }
  func.func @transform_1(%arg0: i32) -> (i32, i32, i32) {
    %c0_i32 = arith.constant 0 : i32
    %c0_i32_0 = arith.constant 0 : i32
    %c0_i32_1 = arith.constant 0 : i32
    %c0_i32_2 = arith.constant 0 : i32
    return %c0_i32, %c0_i32_0, %c0_i32_1 : i32, i32, i32
  }
  func.func @transform_2(%arg0: i32) -> (i32, i32, i32) {
    %c0_i32 = arith.constant 0 : i32
    %c0_i32_0 = arith.constant 0 : i32
    %c0_i32_1 = arith.constant 0 : i32
    %c0_i32_2 = arith.constant 0 : i32
    return %c0_i32, %c0_i32_0, %c0_i32_1 : i32, i32, i32
  }
  func.func @transform_3(%arg0: i32) -> (i32, i32) {
    %c0_i32 = arith.constant 0 : i32
    %c0_i32_0 = arith.constant 0 : i32
    return %arg0, %c0_i32 : i32, i32
  }
}

</mosaic_0001>

<llo_original>
// kernel: expert_forward.1
$region0: #{expert_forward.1}
  #allocation0 [shape = 'u32[]', space=smem, size = 0x4, offset = 0x4, fixed_abs, tag = 'smem constant byte address 0x4 - core index']
  #allocation1 [shape = 'u32[144,128]{1,0:T(1,128)}', space=vmem, size = 0x12000, scoped, tag = 'internal scratch']
  %s0 = inlined_call_operand.vmem [shape: f32[16,128], index: 0, kind: input, shape index: {}]
  %s1 = inlined_call_operand.hbm [shape: f32[2,128,128], index: 1, kind: input, shape index: {}]
  %s2 = inlined_call_operand.vmem [shape: f32[2,1,128], index: 2, kind: input, shape index: {}]
  %s3 = inlined_call_operand.hbm [shape: f32[16,128], index: 3, kind: output, shape index: {}]
  %s4 = sld [smem:[#allocation0]]
  $region26: #{expert_forward.1} parent=0
    _
  %s6 = ssub.s32 1, %s4
  %s7 = scalar_select 0, %s6, %s4
  $region1: #{expert_forward.1} parent=0
    #allocation2 [shape = 'u8[131072]{0}', space=vmem, size = 0x20000, scoped, tag = 'input window, operand 1, single buffered']
    #allocation3 [shape = 's32[1]{0}', space=sflag, size = 0x4, scoped, tag = 'scoped memory for expert_forward.1']
    #allocation4 [shape = 's32[1]{0}', space=sflag, size = 0x4, scoped, tag = 'scoped memory for expert_forward.1']
    #allocation5 [shape = 'u8[8192]{0}', space=vmem, size = 0x2000, scoped, tag = 'output window, operand 0, single buffered']
    %8 = vsyncpa [#allocation3], 0
    %9 = vsyncpa [#allocation4], 0
    // Predicated region
    $region2: #{expert_forward.1} parent=1 // pred_check
      _
    $region3: #{expert_forward.1} parent=1 // pred_check_branch
      %11 = sbr.rel (0) target = $region5
    $region4: #{expert_forward.1} parent=1 // pred_region
      _
    $region5: #{expert_forward.1} parent=1 // pred_fallthru
      _
    // Predicated region
    $region6: #{expert_forward.1} parent=1 // pred_check
      _
    $region7: #{expert_forward.1} parent=1 // pred_check_branch
      %13 = sbr.rel (0) target = $region9
    $region8: #{expert_forward.1} parent=1 // pred_region
      %s15 = ssub.s32 4096, 4096
      %16 = vsyncadd [#allocation3], %s15
      %s17 = sshll.u32 [#allocation2], 4
      %s18 = int_to_ptr.vmem [resolvable:$true] %s17
      %23 = dma.hbm_to_vmem [thread:$0]  %s1, 4096, %s18, [#allocation3], 128, 128, 8
    $region9: #{expert_forward.1} parent=1 // pred_fallthru
      _
    // Predicated region
    $region10: #{expert_forward.1} parent=1 // pred_check
      _
    $region11: #{expert_forward.1} parent=1 // pred_check_branch
      %25 = sbr.rel (0) target = $region13
    $region12: #{expert_forward.1} parent=1 // pred_region
      _
    $region13: #{expert_forward.1} parent=1 // pred_fallthru
      _
    // Predicated region
    $region14: #{expert_forward.1} parent=1 // pred_check
      _
    $region15: #{expert_forward.1} parent=1 // pred_check_branch
      %27 = sbr.rel (0) target = $region17
    $region16: #{expert_forward.1} parent=1 // pred_region
      %28 = dma.done [#allocation3], 4096
    $region17: #{expert_forward.1} parent=1 // pred_fallthru
      _
    %v29 = vld [vmem:[%s2] sm:$0x1]
    %v30 = vld [vmem:[%s2 + $0x1] sm:$0x1]
    %v31 = vld [vmem:[%s0] sm:$0xff]
    %v32 = vld [vmem:[%s0 + $0x8] sm:$0xff]
    %v33 = vld [vmem:[#allocation2] sm:$0xff]
    %v34 = vld [vmem:[#allocation2 + $0x8] sm:$0xff]
    %v35 = vld [vmem:[#allocation2 + $0x10] sm:$0xff]
    %v36 = vld [vmem:[#allocation2 + $0x18] sm:$0xff]
    %v37 = vld [vmem:[#allocation2 + $0x20] sm:$0xff]
    %v38 = vld [vmem:[#allocation2 + $0x28] sm:$0xff]
    %v39 = vld [vmem:[#allocation2 + $0x30] sm:$0xff]
    %v40 = vld [vmem:[#allocation2 + $0x38] sm:$0xff]
    %v41 = vld [vmem:[#allocation2 + $0x40] sm:$0xff]
    %v42 = vld [vmem:[#allocation2 + $0x48] sm:$0xff]
    %v43 = vld [vmem:[#allocation2 + $0x50] sm:$0xff]
    %v44 = vld [vmem:[#allocation2 + $0x58] sm:$0xff]
    %v45 = vld [vmem:[#allocation2 + $0x60] sm:$0xff]
    %v46 = vld [vmem:[#allocation2 + $0x68] sm:$0xff]
    %v47 = vld [vmem:[#allocation2 + $0x70] sm:$0xff]
    %v48 = vld [vmem:[#allocation2 + $0x78] sm:$0xff]
    %v50 = vlaneseq
    %v51 = vshrl.u32 %v50, 7
    %v52 = vsub.s32 0, %v51
    %v53 = vrot.slane %v29, %v52
    %55 = vmatprep.subr.mxu0 0.0
    %56 = vmatpush1.msra.mxu0 %v33
    %57 = vmatprep.subr.mxu0 0.0
    %58 = vmatpush1.msra.mxu0 %v34
    %59 = vmatprep.subr.mxu0 0.0
    %60 = vmatpush1.msra.mxu0 %v35
    %61 = vmatprep.subr.mxu0 0.0
    %62 = vmatpush1.msra.mxu0 %v36
    %63 = vmatprep.subr.mxu0 0.0
    %64 = vmatpush1.msra.mxu0 %v37
    %65 = vmatprep.subr.mxu0 0.0
    %66 = vmatpush1.msra.mxu0 %v38
    %67 = vmatprep.subr.mxu0 0.0
    %68 = vmatpush1.msra.mxu0 %v39
    %69 = vmatprep.subr.mxu0 0.0
    %70 = vmatpush1.msra.mxu0 %v40
    %71 = vmatprep.subr.mxu0 0.0
    %72 = vmatpush1.msra.mxu0 %v41
    %73 = vmatprep.subr.mxu0 0.0
    %74 = vmatpush1.msra.mxu0 %v42
    %75 = vmatprep.subr.mxu0 0.0
    %76 = vmatpush1.msra.mxu0 %v43
    %77 = vmatprep.subr.mxu0 0.0
    %78 = vmatpush1.msra.mxu0 %v44
    %79 = vmatprep.subr.mxu0 0.0
    %80 = vmatpush1.msra.mxu0 %v45
    %81 = vmatprep.subr.mxu0 0.0
    %82 = vmatpush1.msra.mxu0 %v46
    %83 = vmatprep.subr.mxu0 0.0
    %84 = vmatpush1.msra.mxu0 %v47
    %85 = vmatprep.subr.mxu0 0.0
    %86 = vmatpush1.msra.mxu0 %v48
    %87 = vmatprep.subr.mxu0 0.0
    %88 = vmatpush1.msra.mxu0 0.0
    %89 = vmatprep.subr.mxu0 0.0
    %90 = vmatpush1.msra.mxu0 0.0
    %91 = vmatprep.subr.mxu0 0.0
    %92 = vmatpush1.msra.mxu0 0.0
    %93 = vmatprep.subr.mxu0 0.0
    %94 = vmatpush1.msra.mxu0 0.0
    %95 = vmatprep.subr.mxu0 0.0
    %96 = vmatpush1.msra.mxu0 0.0
    %97 = vmatprep.subr.mxu0 0.0
    %98 = vmatpush1.msra.mxu0 0.0
    %99 = vmatprep.subr.mxu0 0.0
    %100 = vmatpush1.msra.mxu0 0.0
    %101 = vmatprep.subr.mxu0 0.0
    %102 = vmatpush1.msra.mxu0 0.0
    %103 = vmatprep.subr.mxu0 0.0
    %104 = vmatpush1.msra.mxu0 0.0
    %105 = vmatprep.subr.mxu0 0.0
    %106 = vmatpush1.msra.mxu0 0.0
    %107 = vmatprep.subr.mxu0 0.0
    %108 = vmatpush1.msra.mxu0 0.0
    %109 = vmatprep.subr.mxu0 0.0
    %110 = vmatpush1.msra.mxu0 0.0
    %111 = vmatprep.subr.mxu0 0.0
    %112 = vmatpush1.msra.mxu0 0.0
    %113 = vmatprep.subr.mxu0 0.0
    %114 = vmatpush1.msra.mxu0 0.0
    %115 = vmatprep.subr.mxu0 0.0
    %116 = vmatpush1.msra.mxu0 0.0
    %117 = vmatprep.subr.mxu0 0.0
    %118 = vmatpush1.msra.mxu0 0.0
    %119 = vmatprep.mubr.f32.mxu0 0.0
    %120 = vmatmul.mubr.f32.gmra.mrb[0].mxu0 %v31
    %v121 = vpop.f32.mrb[0].mxu0
    %v122 = vadd.f32 %v53, %v121
    %v123 = vpop.f32.mrb[0].mxu0
    %124 = vmatprep.mubr.f32.mxu0 0.0
    %125 = vmatmul.mubr.f32.gmra.mrb[0].mxu0 %v32
    %v126 = vpop.f32.mrb[0].mxu0
    %v127 = vadd.f32 %v53, %v126
    %v128 = vpop.f32.mrb[0].mxu0
    %129 = vdwg.mxu0
    %v130 = vmax.f32 %v122, 0.0
    %v131 = vmax.f32 %v127, 0.0
    %s132 = scalar_lea.vmem [#allocation2], 128
    %v133 = vld [vmem:[%s132] sm:$0xff]
    %v134 = vld [vmem:[%s132 + $0x8] sm:$0xff]
    %v135 = vld [vmem:[%s132 + $0x10] sm:$0xff]
    %v136 = vld [vmem:[%s132 + $0x18] sm:$0xff]
    %v137 = vld [vmem:[%s132 + $0x20] sm:$0xff]
    %v138 = vld [vmem:[%s132 + $0x28] sm:$0xff]
    %v139 = vld [vmem:[%s132 + $0x30] sm:$0xff]
    %v140 = vld [vmem:[%s132 + $0x38] sm:$0xff]
    %v141 = vld [vmem:[%s132 + $0x40] sm:$0xff]
    %v142 = vld [vmem:[%s132 + $0x48] sm:$0xff]
    %v143 = vld [vmem:[%s132 + $0x50] sm:$0xff]
    %v144 = vld [vmem:[%s132 + $0x58] sm:$0xff]
    %v145 = vld [vmem:[%s132 + $0x60] sm:$0xff]
    %v146 = vld [vmem:[%s132 + $0x68] sm:$0xff]
    %v147 = vld [vmem:[%s132 + $0x70] sm:$0xff]
    %v148 = vld [vmem:[%s132 + $0x78] sm:$0xff]
    %v150 = vlaneseq
    %v151 = vshrl.u32 %v150, 7
    %v152 = vsub.s32 0, %v151
    %v153 = vrot.slane %v30, %v152
    %155 = vmatprep.subr.mxu0 0.0
    %156 = vmatpush1.msra.mxu0 %v133
    %157 = vmatprep.subr.mxu0 0.0
    %158 = vmatpush1.msra.mxu0 %v134
    %159 = vmatprep.subr.mxu0 0.0
    %160 = vmatpush1.msra.mxu0 %v135
    %161 = vmatprep.subr.mxu0 0.0
    %162 = vmatpush1.msra.mxu0 %v136
    %163 = vmatprep.subr.mxu0 0.0
    %164 = vmatpush1.msra.mxu0 %v137
    %165 = vmatprep.subr.mxu0 0.0
    %166 = vmatpush1.msra.mxu0 %v138
    %167 = vmatprep.subr.mxu0 0.0
    %168 = vmatpush1.msra.mxu0 %v139
    %169 = vmatprep.subr.mxu0 0.0
    %170 = vmatpush1.msra.mxu0 %v140
    %171 = vmatprep.subr.mxu0 0.0
    %172 = vmatpush1.msra.mxu0 %v141
    %173 = vmatprep.subr.mxu0 0.0
    %174 = vmatpush1.msra.mxu0 %v142
    %175 = vmatprep.subr.mxu0 0.0
    %176 = vmatpush1.msra.mxu0 %v143
    %177 = vmatprep.subr.mxu0 0.0
    %178 = vmatpush1.msra.mxu0 %v144
    %179 = vmatprep.subr.mxu0 0.0
    %180 = vmatpush1.msra.mxu0 %v145
    %181 = vmatprep.subr.mxu0 0.0
    %182 = vmatpush1.msra.mxu0 %v146
    %183 = vmatprep.subr.mxu0 0.0
    %184 = vmatpush1.msra.mxu0 %v147
    %185 = vmatprep.subr.mxu0 0.0
    %186 = vmatpush1.msra.mxu0 %v148
    %187 = vmatprep.subr.mxu0 0.0
    %188 = vmatpush1.msra.mxu0 0.0
    %189 = vmatprep.subr.mxu0 0.0
    %190 = vmatpush1.msra.mxu0 0.0
    %191 = vmatprep.subr.mxu0 0.0
    %192 = vmatpush1.msra.mxu0 0.0
    %193 = vmatprep.subr.mxu0 0.0
    %194 = vmatpush1.msra.mxu0 0.0
    %195 = vmatprep.subr.mxu0 0.0
    %196 = vmatpush1.msra.mxu0 0.0
    %197 = vmatprep.subr.mxu0 0.0
    %198 = vmatpush1.msra.mxu0 0.0
    %199 = vmatprep.subr.mxu0 0.0
    %200 = vmatpush1.msra.mxu0 0.0
    %201 = vmatprep.subr.mxu0 0.0
    %202 = vmatpush1.msra.mxu0 0.0
    %203 = vmatprep.subr.mxu0 0.0
    %204 = vmatpush1.msra.mxu0 0.0
    %205 = vmatprep.subr.mxu0 0.0
    %206 = vmatpush1.msra.mxu0 0.0
    %207 = vmatprep.subr.mxu0 0.0
    %208 = vmatpush1.msra.mxu0 0.0
    %209 = vmatprep.subr.mxu0 0.0
    %210 = vmatpush1.msra.mxu0 0.0
    %211 = vmatprep.subr.mxu0 0.0
    %212 = vmatpush1.msra.mxu0 0.0
    %213 = vmatprep.subr.mxu0 0.0
    %214 = vmatpush1.msra.mxu0 0.0
    %215 = vmatprep.subr.mxu0 0.0
    %216 = vmatpush1.msra.mxu0 0.0
    %217 = vmatprep.subr.mxu0 0.0
    %218 = vmatpush1.msra.mxu0 0.0
    %219 = vmatprep.mubr.f32.mxu0 0.0
    %220 = vmatmul.mubr.f32.gmra.mrb[0].mxu0 %v130
    %v221 = vpop.f32.mrb[0].mxu0
    %v222 = vadd.f32 %v153, %v221
    %v223 = vpop.f32.mrb[0].mxu0
    %224 = vmatprep.mubr.f32.mxu0 0.0
    %225 = vmatmul.mubr.f32.gmra.mrb[0].mxu0 %v131
    %v226 = vpop.f32.mrb[0].mxu0
    %v227 = vadd.f32 %v153, %v226
    %v228 = vpop.f32.mrb[0].mxu0
    %229 = vdwg.mxu0
    %v230 = vmax.f32 %v222, 0.0
    %v231 = vmax.f32 %v227, 0.0
    %232 = vst [vmem:[#allocation5] sm:$0xff] %v230
    %233 = vst [vmem:[#allocation5 + $0x8] sm:$0xff] %v231
    // Predicated region
    $region18: #{expert_forward.1} parent=1 // pred_check
      _
    $region19: #{expert_forward.1} parent=1 // pred_check_branch
      %235 = sbr.rel (0) target = $region21
    $region20: #{expert_forward.1} parent=1 // pred_region
      %s237 = ssub.s32 256, 256
      %238 = vsyncadd [#allocation4], %s237
      %s239 = sshll.u32 [#allocation5], 4
      %s240 = int_to_ptr.vmem [resolvable:$true] %s239
      %245 = dma.vmem_to_hbm [thread:$0]  %s240, 256, %s3, [#allocation4], 128, 128, 8
    $region21: #{expert_forward.1} parent=1 // pred_fallthru
      _
    // Predicated region
    $region22: #{expert_forward.1} parent=1 // pred_check
      _
    $region23: #{expert_forward.1} parent=1 // pred_check_branch
      %247 = sbr.rel (0) target = $region25
    $region24: #{expert_forward.1} parent=1 // pred_region
      %248 = dma.done [#allocation4], 256
    $region25: #{expert_forward.1} parent=1 // pred_fallthru
      _
    %249 = vsyncpa [#allocation3], 1
    %250 = vsyncpa [#allocation4], 1

</llo_original>
